<compile_context>
chip_gen: v6e
topology: v6e:2x2x1
jax: 0.10.0
libtpu: 0.0.40
codegen_flags: <defaults>
</compile_context>

<pallas_src>
import jax
import jax.numpy as jnp
from jax.experimental import pallas as pl
from jax.experimental.pallas import tpu as pltpu

LANE = 128          # TPU lane width (last-dim tile)
SUBLANE_F32 = 8     # f32 sublane tile
SUBLANE_BF16 = 16   # bf16 packs two rows per sublane -> (16, 128) native tile


def _cdiv(a, b):
    return -(-a // b)


def _round_up(a, m):
    return _cdiv(a, m) * m


# ----------------------------------------------------------------------------- kernel
def mlp_kernel(x_ref, w1_ref, wst_ref, bst_ref, o_ref):
    """Fused 4-layer MLP on one (tb, input_dim) batch tile.

    encoder: Linear -> ReLU -> Linear ; decoder: Linear -> ReLU -> Linear.
    f32 accumulation via preferred_element_type; MXU inputs in the weight
    dtype (f32 or bf16).  The x tile is streamed as f32 and cast in-kernel
    (VPU) so the wrapper never re-reads x in HBM just to change dtype.
    """
    cdt = w1_ref.dtype
    x = x_ref[...].astype(cdt)

    # encoder
    h = jnp.dot(x, w1_ref[...], preferred_element_type=jnp.float32) + bst_ref[0]
    h = jnp.maximum(h, 0.0)
    h = jnp.dot(h.astype(cdt), wst_ref[0],
                preferred_element_type=jnp.float32) + bst_ref[1]
    # decoder
    h = jnp.dot(h.astype(cdt), wst_ref[1],
                preferred_element_type=jnp.float32) + bst_ref[2]
    h = jnp.maximum(h, 0.0)
    h = jnp.dot(h.astype(cdt), wst_ref[2],
                preferred_element_type=jnp.float32) + bst_ref[3]

    o_ref[...] = h.astype(o_ref.dtype)


# ----------------------------------------------------------------------------- param packing (done once per parameter set)
def pad_params(params, compute_dtype=jnp.float32):
    """Pad & stack the four Linear layers once.

    * All hidden/latent/output feature dims are zero-padded to one common
      lane-multiple width D so w2/w3/w4 stack into a single (3, D, D) array
      and the biases into one (4, 1, D) array (3 resident refs instead of 8).
    * w1's contraction dim (= input_dim) is left UNPADDED to match the
      unpadded streamed x tile.
    * Weights are pre-cast to `compute_dtype` here; biases stay f32 (added to
      the f32 accumulator).
    Zero-padded weight columns + zero biases stay identically zero through
    ReLU, so slicing the final output back to out_dim is exact.
    """
    w1, w2, w3, w4 = params["w1"], params["w2"], params["w3"], params["w4"]
    b1, b2, b3, b4 = params["b1"], params["b2"], params["b3"], params["b4"]
    D = max(_round_up(d, LANE) for d in
            (w1.shape[1], w2.shape[1], w3.shape[1], w4.shape[1]))

    def pad_w(w):   # hidden weight -> (D, D)
        return jnp.pad(w, ((0, D - w.shape[0]), (0, D - w.shape[1])))

    def pad_b(b):   # (1, d) -> (1, D)
        return jnp.pad(b, ((0, 0), (0, D - b.shape[1])))

    w1p = jnp.pad(w1, ((0, 0), (0, D - w1.shape[1])))             # (in_dim, D)
    w_stack = jnp.stack([pad_w(w2), pad_w(w3), pad_w(w4)])        # (3, D, D)
    b_stack = jnp.stack([pad_b(b1), pad_b(b2), pad_b(b3), pad_b(b4)])  # (4,1,D)
    return {
        "w1": w1p.astype(compute_dtype),
        "w_stack": w_stack.astype(compute_dtype),
        "b_stack": b_stack.astype(jnp.float32),
    }


# ----------------------------------------------------------------------------- tiling heuristics
def _tensorcores_per_chip():
    try:
        kind = jax.devices()[0].device_kind.lower()
    except Exception:
        return 1
    # megacore chips (v4/v5p) and v7x expose 2 TensorCores per device that
    # share grid steps under dimension_semantics=("parallel",).
    return 2 if any(t in kind for t in ("v4", "v5p", "v7")) else 1


def _choose_tb(B, ncores, sub_mult, cap=1024):
    """Batch tile: as large as possible (amortize ~0.35us/grid-step).  The
    grid is padded, so no divisibility requirement.  On 2-TC chips prefer an
    even number of equal steps; on 1-TC chips a batch that fits in one tile
    gets grid=(1,)."""
    if B <= cap:
        if ncores >= 2 and B >= 2 * sub_mult:
            return _round_up(_cdiv(B, 2), sub_mult)   # one tile per TensorCore
        return _round_up(B, sub_mult)                 # single grid step
    steps = _cdiv(B, cap)
    if ncores >= 2 and steps % 2 == 1:
        steps += 1                                    # balanced across 2 TCs
    return _round_up(_cdiv(B, steps), sub_mult)


# ----------------------------------------------------------------------------- wrapper
def encoder_template_forward(x, padded_params, out_dim, *, tb=None,
                             interpret=False):
    """x: [B, input_dim] float32.  padded_params: output of pad_params().
    Returns [B, out_dim] float32 (== encoder_template.forward)."""
    B, in_dim = x.shape
    w1 = padded_params["w1"]
    wst = padded_params["w_stack"]
    bst = padded_params["b_stack"]
    assert w1.shape[0] == in_dim
    D = w1.shape[1]

    sub_mult = SUBLANE_BF16 if w1.dtype == jnp.bfloat16 else SUBLANE_F32
    if tb is None:
        tb = _choose_tb(B, _tensorcores_per_chip(), sub_mult)
    else:
        tb = _round_up(tb, sub_mult)

    grid_n = _cdiv(B, tb)
    Bp = grid_n * tb
    xp = x if Bp == B else jnp.pad(x, ((0, Bp - B), (0, 0)))

    # VMEM estimate: double-buffered x/out tiles + f32 intermediates +
    # resident weights.  Only raise the scoped limit when the default
    # (16 MiB on v5e, 32 MiB on v6e/v7x) would be tight.
    est = (2 * tb * in_dim * 4 + 2 * tb * D * 4 + 3 * tb * D * 4
           + (w1.size + wst.size) * w1.dtype.itemsize + bst.size * 4)
    vmem_limit = int(min(2 * est, 96 << 20)) if est > (12 << 20) else None

    out = pl.pallas_call(
        mlp_kernel,
        out_shape=jax.ShapeDtypeStruct((Bp, D), jnp.float32),
        grid_spec=pltpu.PrefetchScalarGridSpec(
            num_scalar_prefetch=0,
            grid=(grid_n,),
            in_specs=[
                # streamed batch tile; feature dim kept at its true width
                # (block == full array extent, exempt from the 128-lane rule)
                pl.BlockSpec((tb, in_dim), lambda i: (i, 0)),
                # weights/biases: constant index_map -> VMEM-resident after
                # the first grid step (no per-step re-DMA)
                pl.BlockSpec(w1.shape, lambda i: (0, 0)),
                pl.BlockSpec(wst.shape, lambda i: (0, 0, 0)),
                pl.BlockSpec(bst.shape, lambda i: (0, 0, 0)),
            ],
            # lane-dense 128-wide output store (unmasked vst)
            out_specs=pl.BlockSpec((tb, D), lambda i: (i, 0)),
        ),
        compiler_params=pltpu.CompilerParams(
            dimension_semantics=("parallel",),
            vmem_limit_bytes=vmem_limit),
        interpret=interpret,
    )(xp, w1, wst, bst)

    return out[:B, :out_dim]


# ----------------------------------------------------------------------------- init (matches PyTorch weights_init)
def xavier_uniform(key, fan_in, fan_out, gain=0.5, dtype=jnp.float32):
    # nn.init.xavier_uniform_(W[out,in], gain=0.5), returned transposed [in,out]
    bound = gain * (6.0 / (fan_in + fan_out)) ** 0.5
    return jax.random.uniform(key, (fan_in, fan_out), dtype=dtype,
                              minval=-bound, maxval=bound)


def init_params(key, input_dim, hidden_enc, latent, hidden_dec, output_dim):
    k1, k2, k3, k4 = jax.random.split(key, 4)
    f32 = jnp.float32
    return {
        "w1": xavier_uniform(k1, input_dim, hidden_enc),
        "b1": jnp.zeros((1, hidden_enc), f32),
        "w2": xavier_uniform(k2, hidden_enc, latent),
        "b2": jnp.zeros((1, latent), f32),
        "w3": xavier_uniform(k3, latent, hidden_dec),
        "b3": jnp.zeros((1, hidden_dec), f32),
        "w4": xavier_uniform(k4, hidden_dec, output_dim),
        "b4": jnp.zeros((1, output_dim), f32),
    }


def reference_forward(x, p):
    h = jnp.maximum(x @ p["w1"] + p["b1"], 0.0)
    h = h @ p["w2"] + p["b2"]
    h = jnp.maximum(h @ p["w3"] + p["b3"], 0.0)
    return h @ p["w4"] + p["b4"]


# ----------------------------------------------------------------------------- demo / test
if __name__ == "__main__":
    # encoder_template(input_dim=32, latent_size=16, hidden_size_rule=[64],
    #                  hidden_size_rule_de=[48], output_dim=32)
    B, input_dim, hidden_enc, latent, hidden_dec, output_dim = 16, 32, 64, 16, 48, 32

    key = jax.random.PRNGKey(0)
    kx, kp, kx2 = jax.random.split(key, 3)
    x = jax.random.normal(kx, (B, input_dim), dtype=jnp.float32)
    params = init_params(kp, input_dim, hidden_enc, latent, hidden_dec, output_dim)
    ref = reference_forward(x, params)

    # f32 compute path (exact vs reference; recommended on v5e)
    padded_f32 = pad_params(params, jnp.float32)
    out = jax.block_until_ready(
        encoder_template_forward(x, padded_f32, output_dim))
    assert out.shape == (B, output_dim)
    assert jnp.allclose(out, ref, atol=1e-5, rtol=1e-5), "f32 mismatch vs reference"

    # awkward batch size: exercises the padded grid (no divisibility needed)
    x2 = jax.random.normal(kx2, (37, input_dim), dtype=jnp.float32)
    out2 = jax.block_until_ready(
        encoder_template_forward(x2, padded_f32, output_dim))
    assert out2.shape == (37, output_dim)
    assert jnp.allclose(out2, reference_forward(x2, params),
                        atol=1e-5, rtol=1e-5), "padded-grid mismatch vs reference"

    # bf16 MXU-input path (v6e/v7x throughput option), f32 accumulation,
    # weights pre-cast once, x cast in-kernel, tb forced to a multiple of 16.
    padded_bf16 = pad_params(params, jnp.bfloat16)
    out_bf16 = jax.block_until_ready(
        encoder_template_forward(x, padded_bf16, output_dim))
    assert out_bf16.shape == (B, output_dim)
    assert jnp.allclose(out_bf16, ref, atol=5e-2, rtol=5e-2), "bf16 mismatch vs reference"

    print("KERNEL_OK")
</pallas_src>

<mosaic_0001>
module attributes {stable_mosaic.version = 11 : i64} {
  func.func @mlp_kernel(%arg0: i32, %arg1: memref<16x32xf32, #tpu.memory_space<vmem>>, %arg2: memref<32x128xf32, #tpu.memory_space<vmem>>, %arg3: memref<3x128x128xf32, #tpu.memory_space<vmem>>, %arg4: memref<4x1x128xf32, #tpu.memory_space<vmem>>, %arg5: memref<16x128xf32, #tpu.memory_space<vmem>>) attributes {dimension_semantics = [#tpu.dimension_semantics<parallel>], iteration_bounds = array<i64: 1>, scalar_prefetch = 0 : i64, scratch_operands = 0 : i64, tpu.core_type = #tpu.core_type<tc>, window_params = [{transform_indices = @transform_0, window_bounds = array<i64: 16, 32>}, {pipeline_mode = #tpu.pipeline_mode<synchronous>, transform_indices = @transform_1, window_bounds = array<i64: 32, 128>}, {pipeline_mode = #tpu.pipeline_mode<synchronous>, transform_indices = @transform_2, window_bounds = array<i64: 3, 128, 128>}, {pipeline_mode = #tpu.pipeline_mode<synchronous>, transform_indices = @transform_3, window_bounds = array<i64: 4, 1, 128>}, {transform_indices = @transform_4, window_bounds = array<i64: 16, 128>}]} {
    %c0 = arith.constant 0 : index
    %c0_0 = arith.constant 0 : index
    %0 = vector.load %arg1[%c0, %c0_0] : memref<16x32xf32, #tpu.memory_space<vmem>>, vector<16x32xf32>
    %c0_1 = arith.constant 0 : index
    %c0_2 = arith.constant 0 : index
    %1 = vector.load %arg2[%c0_1, %c0_2] : memref<32x128xf32, #tpu.memory_space<vmem>>, vector<32x128xf32>
    %cst = arith.constant dense<0.000000e+00> : vector<16x128xf32>
    %2 = tpu.matmul %0, %1, %cst {dimension_numbers = #tpu.dot_dimension_numbers<[1], [0], [0], [1], [0, 0, 1, 1], [], []>} : vector<16x32xf32>, vector<32x128xf32>, vector<16x128xf32> -> vector<16x128xf32>
    %c0_3 = arith.constant 0 : index
    %c0_4 = arith.constant 0 : index
    %c0_5 = arith.constant 0 : index
    %3 = vector.load %arg4[%c0_3, %c0_4, %c0_5] : memref<4x1x128xf32, #tpu.memory_space<vmem>>, vector<1x1x128xf32>
    %4 = vector.shape_cast %3 : vector<1x1x128xf32> to vector<1x128xf32>
    %5 = vector.broadcast %4 : vector<1x128xf32> to vector<16x128xf32>
    %6 = arith.addf %2, %5 : vector<16x128xf32>
    %cst_6 = arith.constant 0.000000e+00 : f32
    %7 = vector.broadcast %cst_6 : f32 to vector<16x128xf32>
    %8 = arith.maximumf %6, %7 : vector<16x128xf32>
    %c0_7 = arith.constant 0 : index
    %c0_8 = arith.constant 0 : index
    %c0_9 = arith.constant 0 : index
    %9 = vector.load %arg3[%c0_7, %c0_8, %c0_9] : memref<3x128x128xf32, #tpu.memory_space<vmem>>, vector<1x128x128xf32>
    %10 = vector.shape_cast %9 : vector<1x128x128xf32> to vector<128x128xf32>
    %cst_10 = arith.constant dense<0.000000e+00> : vector<16x128xf32>
    %11 = tpu.matmul %8, %10, %cst_10 {dimension_numbers = #tpu.dot_dimension_numbers<[1], [0], [0], [1], [0, 0, 1, 1], [], []>} : vector<16x128xf32>, vector<128x128xf32>, vector<16x128xf32> -> vector<16x128xf32>
    %c1 = arith.constant 1 : index
    %c0_11 = arith.constant 0 : index
    %c0_12 = arith.constant 0 : index
    %12 = vector.load %arg4[%c1, %c0_11, %c0_12] : memref<4x1x128xf32, #tpu.memory_space<vmem>>, vector<1x1x128xf32>
    %13 = vector.shape_cast %12 : vector<1x1x128xf32> to vector<1x128xf32>
    %14 = vector.broadcast %13 : vector<1x128xf32> to vector<16x128xf32>
    %15 = arith.addf %11, %14 : vector<16x128xf32>
    %c1_13 = arith.constant 1 : index
    %c0_14 = arith.constant 0 : index
    %c0_15 = arith.constant 0 : index
    %16 = vector.load %arg3[%c1_13, %c0_14, %c0_15] : memref<3x128x128xf32, #tpu.memory_space<vmem>>, vector<1x128x128xf32>
    %17 = vector.shape_cast %16 : vector<1x128x128xf32> to vector<128x128xf32>
    %cst_16 = arith.constant dense<0.000000e+00> : vector<16x128xf32>
    %18 = tpu.matmul %15, %17, %cst_16 {dimension_numbers = #tpu.dot_dimension_numbers<[1], [0], [0], [1], [0, 0, 1, 1], [], []>} : vector<16x128xf32>, vector<128x128xf32>, vector<16x128xf32> -> vector<16x128xf32>
    %c2 = arith.constant 2 : index
    %c0_17 = arith.constant 0 : index
    %c0_18 = arith.constant 0 : index
    %19 = vector.load %arg4[%c2, %c0_17, %c0_18] : memref<4x1x128xf32, #tpu.memory_space<vmem>>, vector<1x1x128xf32>
    %20 = vector.shape_cast %19 : vector<1x1x128xf32> to vector<1x128xf32>
    %21 = vector.broadcast %20 : vector<1x128xf32> to vector<16x128xf32>
    %22 = arith.addf %18, %21 : vector<16x128xf32>
    %cst_19 = arith.constant 0.000000e+00 : f32
    %23 = vector.broadcast %cst_19 : f32 to vector<16x128xf32>
    %24 = arith.maximumf %22, %23 : vector<16x128xf32>
    %c2_20 = arith.constant 2 : index
    %c0_21 = arith.constant 0 : index
    %c0_22 = arith.constant 0 : index
    %25 = vector.load %arg3[%c2_20, %c0_21, %c0_22] : memref<3x128x128xf32, #tpu.memory_space<vmem>>, vector<1x128x128xf32>
    %26 = vector.shape_cast %25 : vector<1x128x128xf32> to vector<128x128xf32>
    %cst_23 = arith.constant dense<0.000000e+00> : vector<16x128xf32>
    %27 = tpu.matmul %24, %26, %cst_23 {dimension_numbers = #tpu.dot_dimension_numbers<[1], [0], [0], [1], [0, 0, 1, 1], [], []>} : vector<16x128xf32>, vector<128x128xf32>, vector<16x128xf32> -> vector<16x128xf32>
    %c3 = arith.constant 3 : index
    %c0_24 = arith.constant 0 : index
    %c0_25 = arith.constant 0 : index
    %28 = vector.load %arg4[%c3, %c0_24, %c0_25] : memref<4x1x128xf32, #tpu.memory_space<vmem>>, vector<1x1x128xf32>
    %29 = vector.shape_cast %28 : vector<1x1x128xf32> to vector<1x128xf32>
    %30 = vector.broadcast %29 : vector<1x128xf32> to vector<16x128xf32>
    %31 = arith.addf %27, %30 : vector<16x128xf32>
    %c0_26 = arith.constant 0 : index
    %c0_27 = arith.constant 0 : index
    %32 = vector.load %arg5[%c0_26, %c0_27] : memref<16x128xf32, #tpu.memory_space<vmem>>, vector<16x128xf32>
    tpu.vector_store %arg5[%c0_26, %c0_27], %31 {strides = array<i32>} : memref<16x128xf32, #tpu.memory_space<vmem>>, vector<16x128xf32>,
    return
  }
  func.func @transform_0(%arg0: i32) -> (i32, i32) {
    %c0_i32 = arith.constant 0 : i32
    %c0_i32_0 = arith.constant 0 : i32
    return %arg0, %c0_i32 : i32, i32
  }
  func.func @transform_1(%arg0: i32) -> (i32, i32) {
    %c0_i32 = arith.constant 0 : i32
    %c0_i32_0 = arith.constant 0 : i32
    %c0_i32_1 = arith.constant 0 : i32
    return %c0_i32, %c0_i32_0 : i32, i32
  }
  func.func @transform_2(%arg0: i32) -> (i32, i32, i32) {
    %c0_i32 = arith.constant 0 : i32
    %c0_i32_0 = arith.constant 0 : i32
    %c0_i32_1 = arith.constant 0 : i32
    %c0_i32_2 = arith.constant 0 : i32
    return %c0_i32, %c0_i32_0, %c0_i32_1 : i32, i32, i32
  }
  func.func @transform_3(%arg0: i32) -> (i32, i32, i32) {
    %c0_i32 = arith.constant 0 : i32
    %c0_i32_0 = arith.constant 0 : i32
    %c0_i32_1 = arith.constant 0 : i32
    %c0_i32_2 = arith.constant 0 : i32
    return %c0_i32, %c0_i32_0, %c0_i32_1 : i32, i32, i32
  }
  func.func @transform_4(%arg0: i32) -> (i32, i32) {
    %c0_i32 = arith.constant 0 : i32
    %c0_i32_0 = arith.constant 0 : i32
    return %arg0, %c0_i32 : i32, i32
  }
}

</mosaic_0001>

<llo_original>
// kernel: tpu_custom_call.1
$region0: #{tpu_custom_call.1}
  #allocation0 [shape = 'u32[]', space=smem, size = 0x4, offset = 0x4, fixed_abs, tag = 'smem constant byte address 0x4 - core index']
  #allocation1 [shape = 'u32[144,128]{1,0:T(1,128)}', space=vmem, size = 0x12000, scoped, tag = 'internal scratch']
  %s0 = inlined_call_operand.hbm [shape: f32[16,32], index: 0, kind: input, shape index: {}]
  %s1 = inlined_call_operand.hbm [shape: f32[32,128], index: 1, kind: input, shape index: {}]
  %s2 = inlined_call_operand.hbm [shape: f32[3,128,128], index: 2, kind: input, shape index: {}]
  %s3 = inlined_call_operand.vmem [shape: f32[4,1,128], index: 3, kind: input, shape index: {}]
  %s4 = inlined_call_operand.hbm [shape: f32[16,128], index: 4, kind: output, shape index: {}]
  %s5 = sld [smem:[#allocation0]]
  $region38: #{tpu_custom_call.1} parent=0
    _
  %s7 = ssub.s32 1, %s5
  %s8 = scalar_select 0, %s7, %s5
  $region1: #{tpu_custom_call.1} parent=0
    #allocation2 [shape = 'u8[8192]{0}', space=vmem, size = 0x2000, scoped, tag = 'input window, operand 0, single buffered']
    #allocation3 [shape = 's32[1]{0}', space=sflag, size = 0x4, scoped, tag = 'scoped memory for tpu_custom_call.1']
    #allocation4 [shape = 's32[1]{0}', space=sflag, size = 0x4, scoped, tag = 'scoped memory for tpu_custom_call.1']
    #allocation5 [shape = 'u8[16384]{0}', space=vmem, size = 0x4000, scoped, tag = 'input window, operand 1, single buffered']
    #allocation6 [shape = 's32[1]{0}', space=sflag, size = 0x4, scoped, tag = 'scoped memory for tpu_custom_call.1']
    #allocation7 [shape = 'u8[196608]{0}', space=vmem, size = 0x30000, scoped, tag = 'input window, operand 2, single buffered']
    #allocation8 [shape = 'u8[8192]{0}', space=vmem, size = 0x2000, scoped, tag = 'output window, operand 0, single buffered']
    %9 = vsyncpa [#allocation3], 0
    %10 = vsyncpa [#allocation6], 0
    %11 = vsyncpa [#allocation4], 0
    // Predicated region
    $region2: #{tpu_custom_call.1} parent=1 // pred_check
      _
    $region3: #{tpu_custom_call.1} parent=1 // pred_check_branch
      %13 = sbr.rel (0) target = $region5
    $region4: #{tpu_custom_call.1} parent=1 // pred_region
      %s15 = ssub.s32 256, 256
      %16 = vsyncadd [#allocation3], %s15
      %s17 = sshll.u32 [#allocation2], 4
      %s18 = int_to_ptr.vmem [resolvable:$true] %s17
      %23 = dma.hbm_to_vmem [thread:$0]  %s0, 256, %s18, [#allocation3], 128, 128, 8
    $region5: #{tpu_custom_call.1} parent=1 // pred_fallthru
      _
    // Predicated region
    $region6: #{tpu_custom_call.1} parent=1 // pred_check
      _
    $region7: #{tpu_custom_call.1} parent=1 // pred_check_branch
      %25 = sbr.rel (0) target = $region9
    $region8: #{tpu_custom_call.1} parent=1 // pred_region
      %s27 = ssub.s32 512, 512
      %28 = vsyncadd [#allocation6], %s27
      %s29 = sshll.u32 [#allocation5], 4
      %s30 = int_to_ptr.vmem [resolvable:$true] %s29
      %35 = dma.hbm_to_vmem [thread:$0]  %s1, 512, %s30, [#allocation6], 128, 128, 8
    $region9: #{tpu_custom_call.1} parent=1 // pred_fallthru
      _
    // Predicated region
    $region10: #{tpu_custom_call.1} parent=1 // pred_check
      _
    $region11: #{tpu_custom_call.1} parent=1 // pred_check_branch
      %37 = sbr.rel (0) target = $region13
    $region12: #{tpu_custom_call.1} parent=1 // pred_region
      %s39 = ssub.s32 6144, 6144
      %40 = vsyncadd [#allocation6], %s39
      %s41 = sshll.u32 [#allocation7], 4
      %s42 = int_to_ptr.vmem [resolvable:$true] %s41
      %47 = dma.hbm_to_vmem [thread:$0]  %s2, 6144, %s42, [#allocation6], 128, 128, 8
    $region13: #{tpu_custom_call.1} parent=1 // pred_fallthru
      _
    // Predicated region
    $region14: #{tpu_custom_call.1} parent=1 // pred_check
      _
    $region15: #{tpu_custom_call.1} parent=1 // pred_check_branch
      %49 = sbr.rel (0) target = $region17
    $region16: #{tpu_custom_call.1} parent=1 // pred_region
      _
    $region17: #{tpu_custom_call.1} parent=1 // pred_fallthru
      _
    // Predicated region
    $region18: #{tpu_custom_call.1} parent=1 // pred_check
      _
    $region19: #{tpu_custom_call.1} parent=1 // pred_check_branch
      %51 = sbr.rel (0) target = $region21
    $region20: #{tpu_custom_call.1} parent=1 // pred_region
      %52 = dma.done [#allocation3], 256
    $region21: #{tpu_custom_call.1} parent=1 // pred_fallthru
      _
    // Predicated region
    $region22: #{tpu_custom_call.1} parent=1 // pred_check
      _
    $region23: #{tpu_custom_call.1} parent=1 // pred_check_branch
      %54 = sbr.rel (0) target = $region25
    $region24: #{tpu_custom_call.1} parent=1 // pred_region
      %55 = dma.done [#allocation6], 512
    $region25: #{tpu_custom_call.1} parent=1 // pred_fallthru
      _
    // Predicated region
    $region26: #{tpu_custom_call.1} parent=1 // pred_check
      _
    $region27: #{tpu_custom_call.1} parent=1 // pred_check_branch
      %57 = sbr.rel (0) target = $region29
    $region28: #{tpu_custom_call.1} parent=1 // pred_region
      %58 = dma.done [#allocation6], 6144
    $region29: #{tpu_custom_call.1} parent=1 // pred_fallthru
      _
    %v59 = vld [vmem:[#allocation2] sm:$0xff]
    %v60 = vld [vmem:[#allocation2 + $0x8] sm:$0xff]
    %v61 = vld [vmem:[#allocation5] sm:$0xff]
    %v62 = vld [vmem:[#allocation5 + $0x8] sm:$0xff]
    %v63 = vld [vmem:[#allocation5 + $0x10] sm:$0xff]
    %v64 = vld [vmem:[#allocation5 + $0x18] sm:$0xff]
    %v65 = vld [vmem:[%s3] sm:$0x1]
    %v67 = vlaneseq
    %v68 = vshrl.u32 %v67, 7
    %v69 = vsub.s32 0, %v68
    %v70 = vrot.slane %v65, %v69
    %vm72 = vcmask 261120
    %v74 = vsel %vm72, %v59, 0
    %v77 = vsel %vm72, %v60, 0
    %79 = vmatprep.subr.mxu0 0.0
    %80 = vmatpush1.msra.mxu0 0.0
    %81 = vmatprep.subr.mxu0 0.0
    %82 = vmatpush1.msra.mxu0 0.0
    %83 = vmatprep.subr.mxu0 0.0
    %84 = vmatpush1.msra.mxu0 0.0
    %85 = vmatprep.subr.mxu0 0.0
    %86 = vmatpush1.msra.mxu0 0.0
    %87 = vmatprep.subr.mxu0 0.0
    %88 = vmatpush1.msra.mxu0 0.0
    %89 = vmatprep.subr.mxu0 0.0
    %90 = vmatpush1.msra.mxu0 0.0
    %91 = vmatprep.subr.mxu0 0.0
    %92 = vmatpush1.msra.mxu0 0.0
    %93 = vmatprep.subr.mxu0 0.0
    %94 = vmatpush1.msra.mxu0 0.0
    %95 = vmatprep.subr.mxu0 0.0
    %96 = vmatpush1.msra.mxu0 0.0
    %97 = vmatprep.subr.mxu0 0.0
    %98 = vmatpush1.msra.mxu0 0.0
    %99 = vmatprep.subr.mxu0 0.0
    %100 = vmatpush1.msra.mxu0 0.0
    %101 = vmatprep.subr.mxu0 0.0
    %102 = vmatpush1.msra.mxu0 0.0
    %103 = vmatprep.subr.mxu0 0.0
    %104 = vmatpush1.msra.mxu0 %v64
    %105 = vmatprep.subr.mxu0 0.0
    %106 = vmatpush1.msra.mxu0 %v63
    %107 = vmatprep.subr.mxu0 0.0
    %108 = vmatpush1.msra.mxu0 %v62
    %109 = vmatprep.subr.mxu0 0.0
    %110 = vmatpush1.msra.mxu0 %v61
    %111 = vmatprep.subr.mxu0 0.0
    %112 = vmatpush2.msra.mxu0 0.0
    %113 = vmatprep.subr.mxu0 0.0
    %114 = vmatpush2.msra.mxu0 0.0
    %115 = vmatprep.subr.mxu0 0.0
    %116 = vmatpush2.msra.mxu0 0.0
    %117 = vmatprep.subr.mxu0 0.0
    %118 = vmatpush2.msra.mxu0 0.0
    %119 = vmatprep.subr.mxu0 0.0
    %120 = vmatpush2.msra.mxu0 0.0
    %121 = vmatprep.subr.mxu0 0.0
    %122 = vmatpush2.msra.mxu0 0.0
    %123 = vmatprep.subr.mxu0 0.0
    %124 = vmatpush2.msra.mxu0 0.0
    %125 = vmatprep.subr.mxu0 0.0
    %126 = vmatpush2.msra.mxu0 0.0
    %127 = vmatprep.subr.mxu0 0.0
    %128 = vmatpush2.msra.mxu0 0.0
    %129 = vmatprep.subr.mxu0 0.0
    %130 = vmatpush2.msra.mxu0 0.0
    %131 = vmatprep.subr.mxu0 0.0
    %132 = vmatpush2.msra.mxu0 0.0
    %133 = vmatprep.subr.mxu0 0.0
    %134 = vmatpush2.msra.mxu0 0.0
    %135 = vmatprep.subr.mxu0 0.0
    %136 = vmatpush2.msra.mxu0 0.0
    %137 = vmatprep.subr.mxu0 0.0
    %138 = vmatpush2.msra.mxu0 0.0
    %139 = vmatprep.subr.mxu0 0.0
    %140 = vmatpush2.msra.mxu0 0.0
    %141 = vmatprep.subr.mxu0 0.0
    %142 = vmatpush2.msra.mxu0 0.0
    %143 = vmatprep.mubr.f32.mxu0 0.0
    %144 = vmatmul.mubr.f32.gmra.mxu0 %v74
    %v145 = vpop.f32.mrf.mxu0
    %v146 = vadd.f32 %v70, %v145
    %v147 = vpop.f32.mrf.mxu0
    %148 = vmatprep.mubr.f32.mxu0 0.0
    %149 = vmatmul.mubr.f32.gmra.mxu0 %v77
    %v150 = vpop.f32.mrf.mxu0
    %v151 = vadd.f32 %v70, %v150
    %v152 = vpop.f32.mrf.mxu0
    %153 = vdwg.mxu0
    %v154 = vmax.f32 %v146, 0.0
    %v155 = vmax.f32 %v151, 0.0
    %v156 = vld [vmem:[#allocation7] sm:$0xff]
    %v157 = vld [vmem:[#allocation7 + $0x8] sm:$0xff]
    %v158 = vld [vmem:[#allocation7 + $0x10] sm:$0xff]
    %v159 = vld [vmem:[#allocation7 + $0x18] sm:$0xff]
    %v160 = vld [vmem:[#allocation7 + $0x20] sm:$0xff]
    %v161 = vld [vmem:[#allocation7 + $0x28] sm:$0xff]
    %v162 = vld [vmem:[#allocation7 + $0x30] sm:$0xff]
    %v163 = vld [vmem:[#allocation7 + $0x38] sm:$0xff]
    %v164 = vld [vmem:[#allocation7 + $0x40] sm:$0xff]
    %v165 = vld [vmem:[#allocation7 + $0x48] sm:$0xff]
    %v166 = vld [vmem:[#allocation7 + $0x50] sm:$0xff]
    %v167 = vld [vmem:[#allocation7 + $0x58] sm:$0xff]
    %v168 = vld [vmem:[#allocation7 + $0x60] sm:$0xff]
    %v169 = vld [vmem:[#allocation7 + $0x68] sm:$0xff]
    %v170 = vld [vmem:[#allocation7 + $0x70] sm:$0xff]
    %v171 = vld [vmem:[#allocation7 + $0x78] sm:$0xff]
    %s172 = scalar_lea.vmem %s3, 1
    %v173 = vld [vmem:[%s172] sm:$0x1]
    %v175 = vlaneseq
    %v176 = vshrl.u32 %v175, 7
    %v177 = vsub.s32 0, %v176
    %v178 = vrot.slane %v173, %v177
    %180 = vmatprep.subr.mxu0 0.0
    %181 = vmatpush1.msra.mxu0 %v171
    %182 = vmatprep.subr.mxu0 0.0
    %183 = vmatpush1.msra.mxu0 %v170
    %184 = vmatprep.subr.mxu0 0.0
    %185 = vmatpush1.msra.mxu0 %v169
    %186 = vmatprep.subr.mxu0 0.0
    %187 = vmatpush1.msra.mxu0 %v168
    %188 = vmatprep.subr.mxu0 0.0
    %189 = vmatpush1.msra.mxu0 %v167
    %190 = vmatprep.subr.mxu0 0.0
    %191 = vmatpush1.msra.mxu0 %v166
    %192 = vmatprep.subr.mxu0 0.0
    %193 = vmatpush1.msra.mxu0 %v165
    %194 = vmatprep.subr.mxu0 0.0
    %195 = vmatpush1.msra.mxu0 %v164
    %196 = vmatprep.subr.mxu0 0.0
    %197 = vmatpush1.msra.mxu0 %v163
    %198 = vmatprep.subr.mxu0 0.0
    %199 = vmatpush1.msra.mxu0 %v162
    %200 = vmatprep.subr.mxu0 0.0
    %201 = vmatpush1.msra.mxu0 %v161
    %202 = vmatprep.subr.mxu0 0.0
    %203 = vmatpush1.msra.mxu0 %v160
    %204 = vmatprep.subr.mxu0 0.0
    %205 = vmatpush1.msra.mxu0 %v159
    %206 = vmatprep.subr.mxu0 0.0
    %207 = vmatpush1.msra.mxu0 %v158
    %208 = vmatprep.subr.mxu0 0.0
    %209 = vmatpush1.msra.mxu0 %v157
    %210 = vmatprep.subr.mxu0 0.0
    %211 = vmatpush1.msra.mxu0 %v156
    %212 = vmatprep.subr.mxu0 0.0
    %213 = vmatpush2.msra.mxu0 0.0
    %214 = vmatprep.subr.mxu0 0.0
    %215 = vmatpush2.msra.mxu0 0.0
    %216 = vmatprep.subr.mxu0 0.0
    %217 = vmatpush2.msra.mxu0 0.0
    %218 = vmatprep.subr.mxu0 0.0
    %219 = vmatpush2.msra.mxu0 0.0
    %220 = vmatprep.subr.mxu0 0.0
    %221 = vmatpush2.msra.mxu0 0.0
    %222 = vmatprep.subr.mxu0 0.0
    %223 = vmatpush2.msra.mxu0 0.0
    %224 = vmatprep.subr.mxu0 0.0
    %225 = vmatpush2.msra.mxu0 0.0
    %226 = vmatprep.subr.mxu0 0.0
    %227 = vmatpush2.msra.mxu0 0.0
    %228 = vmatprep.subr.mxu0 0.0
    %229 = vmatpush2.msra.mxu0 0.0
    %230 = vmatprep.subr.mxu0 0.0
    %231 = vmatpush2.msra.mxu0 0.0
    %232 = vmatprep.subr.mxu0 0.0
    %233 = vmatpush2.msra.mxu0 0.0
    %234 = vmatprep.subr.mxu0 0.0
    %235 = vmatpush2.msra.mxu0 0.0
    %236 = vmatprep.subr.mxu0 0.0
    %237 = vmatpush2.msra.mxu0 0.0
    %238 = vmatprep.subr.mxu0 0.0
    %239 = vmatpush2.msra.mxu0 0.0
    %240 = vmatprep.subr.mxu0 0.0
    %241 = vmatpush2.msra.mxu0 0.0
    %242 = vmatprep.subr.mxu0 0.0
    %243 = vmatpush2.msra.mxu0 0.0
    %244 = vmatprep.mubr.f32.mxu0 0.0
    %245 = vmatmul.mubr.f32.gmra.mxu0 %v154
    %v246 = vpop.f32.mrf.mxu0
    %v247 = vadd.f32 %v178, %v246
    %v248 = vpop.f32.mrf.mxu0
    %249 = vmatprep.mubr.f32.mxu0 0.0
    %250 = vmatmul.mubr.f32.gmra.mxu0 %v155
    %v251 = vpop.f32.mrf.mxu0
    %v252 = vadd.f32 %v178, %v251
    %v253 = vpop.f32.mrf.mxu0
    %254 = vdwg.mxu0
    %s255 = scalar_lea.vmem [#allocation7], 128
    %v256 = vld [vmem:[%s255] sm:$0xff]
    %v257 = vld [vmem:[%s255 + $0x8] sm:$0xff]
    %v258 = vld [vmem:[%s255 + $0x10] sm:$0xff]
    %v259 = vld [vmem:[%s255 + $0x18] sm:$0xff]
    %v260 = vld [vmem:[%s255 + $0x20] sm:$0xff]
    %v261 = vld [vmem:[%s255 + $0x28] sm:$0xff]
    %v262 = vld [vmem:[%s255 + $0x30] sm:$0xff]
    %v263 = vld [vmem:[%s255 + $0x38] sm:$0xff]
    %v264 = vld [vmem:[%s255 + $0x40] sm:$0xff]
    %v265 = vld [vmem:[%s255 + $0x48] sm:$0xff]
    %v266 = vld [vmem:[%s255 + $0x50] sm:$0xff]
    %v267 = vld [vmem:[%s255 + $0x58] sm:$0xff]
    %v268 = vld [vmem:[%s255 + $0x60] sm:$0xff]
    %v269 = vld [vmem:[%s255 + $0x68] sm:$0xff]
    %v270 = vld [vmem:[%s255 + $0x70] sm:$0xff]
    %v271 = vld [vmem:[%s255 + $0x78] sm:$0xff]
    %s272 = scalar_lea.vmem %s3, 2
    %v273 = vld [vmem:[%s272] sm:$0x1]
    %v275 = vlaneseq
    %v276 = vshrl.u32 %v275, 7
    %v277 = vsub.s32 0, %v276
    %v278 = vrot.slane %v273, %v277
    %280 = vmatprep.subr.mxu0 0.0
    %281 = vmatpush1.msra.mxu0 %v271
    %282 = vmatprep.subr.mxu0 0.0
    %283 = vmatpush1.msra.mxu0 %v270
    %284 = vmatprep.subr.mxu0 0.0
    %285 = vmatpush1.msra.mxu0 %v269
    %286 = vmatprep.subr.mxu0 0.0
    %287 = vmatpush1.msra.mxu0 %v268
    %288 = vmatprep.subr.mxu0 0.0
    %289 = vmatpush1.msra.mxu0 %v267
    %290 = vmatprep.subr.mxu0 0.0
    %291 = vmatpush1.msra.mxu0 %v266
    %292 = vmatprep.subr.mxu0 0.0
    %293 = vmatpush1.msra.mxu0 %v265
    %294 = vmatprep.subr.mxu0 0.0
    %295 = vmatpush1.msra.mxu0 %v264
    %296 = vmatprep.subr.mxu0 0.0
    %297 = vmatpush1.msra.mxu0 %v263
    %298 = vmatprep.subr.mxu0 0.0
    %299 = vmatpush1.msra.mxu0 %v262
    %300 = vmatprep.subr.mxu0 0.0
    %301 = vmatpush1.msra.mxu0 %v261
    %302 = vmatprep.subr.mxu0 0.0
    %303 = vmatpush1.msra.mxu0 %v260
    %304 = vmatprep.subr.mxu0 0.0
    %305 = vmatpush1.msra.mxu0 %v259
    %306 = vmatprep.subr.mxu0 0.0
    %307 = vmatpush1.msra.mxu0 %v258
    %308 = vmatprep.subr.mxu0 0.0
    %309 = vmatpush1.msra.mxu0 %v257
    %310 = vmatprep.subr.mxu0 0.0
    %311 = vmatpush1.msra.mxu0 %v256
    %312 = vmatprep.subr.mxu0 0.0
    %313 = vmatpush2.msra.mxu0 0.0
    %314 = vmatprep.subr.mxu0 0.0
    %315 = vmatpush2.msra.mxu0 0.0
    %316 = vmatprep.subr.mxu0 0.0
    %317 = vmatpush2.msra.mxu0 0.0
    %318 = vmatprep.subr.mxu0 0.0
    %319 = vmatpush2.msra.mxu0 0.0
    %320 = vmatprep.subr.mxu0 0.0
    %321 = vmatpush2.msra.mxu0 0.0
    %322 = vmatprep.subr.mxu0 0.0
    %323 = vmatpush2.msra.mxu0 0.0
    %324 = vmatprep.subr.mxu0 0.0
    %325 = vmatpush2.msra.mxu0 0.0
    %326 = vmatprep.subr.mxu0 0.0
    %327 = vmatpush2.msra.mxu0 0.0
    %328 = vmatprep.subr.mxu0 0.0
    %329 = vmatpush2.msra.mxu0 0.0
    %330 = vmatprep.subr.mxu0 0.0
    %331 = vmatpush2.msra.mxu0 0.0
    %332 = vmatprep.subr.mxu0 0.0
    %333 = vmatpush2.msra.mxu0 0.0
    %334 = vmatprep.subr.mxu0 0.0
    %335 = vmatpush2.msra.mxu0 0.0
    %336 = vmatprep.subr.mxu0 0.0
    %337 = vmatpush2.msra.mxu0 0.0
    %338 = vmatprep.subr.mxu0 0.0
    %339 = vmatpush2.msra.mxu0 0.0
    %340 = vmatprep.subr.mxu0 0.0
    %341 = vmatpush2.msra.mxu0 0.0
    %342 = vmatprep.subr.mxu0 0.0
    %343 = vmatpush2.msra.mxu0 0.0
    %344 = vmatprep.mubr.f32.mxu0 0.0
    %345 = vmatmul.mubr.f32.gmra.mxu0 %v247
    %v346 = vpop.f32.mrf.mxu0
    %v347 = vadd.f32 %v278, %v346
    %v348 = vpop.f32.mrf.mxu0
    %349 = vmatprep.mubr.f32.mxu0 0.0
    %350 = vmatmul.mubr.f32.gmra.mxu0 %v252
    %v351 = vpop.f32.mrf.mxu0
    %v352 = vadd.f32 %v278, %v351
    %v353 = vpop.f32.mrf.mxu0
    %354 = vdwg.mxu0
    %v355 = vmax.f32 %v347, 0.0
    %v356 = vmax.f32 %v352, 0.0
    %s357 = scalar_lea.vmem [#allocation7], 256
    %v358 = vld [vmem:[%s357] sm:$0xff]
    %v359 = vld [vmem:[%s357 + $0x8] sm:$0xff]
    %v360 = vld [vmem:[%s357 + $0x10] sm:$0xff]
    %v361 = vld [vmem:[%s357 + $0x18] sm:$0xff]
    %v362 = vld [vmem:[%s357 + $0x20] sm:$0xff]
    %v363 = vld [vmem:[%s357 + $0x28] sm:$0xff]
    %v364 = vld [vmem:[%s357 + $0x30] sm:$0xff]
    %v365 = vld [vmem:[%s357 + $0x38] sm:$0xff]
    %v366 = vld [vmem:[%s357 + $0x40] sm:$0xff]
    %v367 = vld [vmem:[%s357 + $0x48] sm:$0xff]
    %v368 = vld [vmem:[%s357 + $0x50] sm:$0xff]
    %v369 = vld [vmem:[%s357 + $0x58] sm:$0xff]
    %v370 = vld [vmem:[%s357 + $0x60] sm:$0xff]
    %v371 = vld [vmem:[%s357 + $0x68] sm:$0xff]
    %v372 = vld [vmem:[%s357 + $0x70] sm:$0xff]
    %v373 = vld [vmem:[%s357 + $0x78] sm:$0xff]
    %s374 = scalar_lea.vmem %s3, 3
    %v375 = vld [vmem:[%s374] sm:$0x1]
    %v377 = vlaneseq
    %v378 = vshrl.u32 %v377, 7
    %v379 = vsub.s32 0, %v378
    %v380 = vrot.slane %v375, %v379
    %382 = vmatprep.subr.mxu0 0.0
    %383 = vmatpush1.msra.mxu0 %v373
    %384 = vmatprep.subr.mxu0 0.0
    %385 = vmatpush1.msra.mxu0 %v372
    %386 = vmatprep.subr.mxu0 0.0
    %387 = vmatpush1.msra.mxu0 %v371
    %388 = vmatprep.subr.mxu0 0.0
    %389 = vmatpush1.msra.mxu0 %v370
    %390 = vmatprep.subr.mxu0 0.0
    %391 = vmatpush1.msra.mxu0 %v369
    %392 = vmatprep.subr.mxu0 0.0
    %393 = vmatpush1.msra.mxu0 %v368
    %394 = vmatprep.subr.mxu0 0.0
    %395 = vmatpush1.msra.mxu0 %v367
    %396 = vmatprep.subr.mxu0 0.0
    %397 = vmatpush1.msra.mxu0 %v366
    %398 = vmatprep.subr.mxu0 0.0
    %399 = vmatpush1.msra.mxu0 %v365
    %400 = vmatprep.subr.mxu0 0.0
    %401 = vmatpush1.msra.mxu0 %v364
    %402 = vmatprep.subr.mxu0 0.0
    %403 = vmatpush1.msra.mxu0 %v363
    %404 = vmatprep.subr.mxu0 0.0
    %405 = vmatpush1.msra.mxu0 %v362
    %406 = vmatprep.subr.mxu0 0.0
    %407 = vmatpush1.msra.mxu0 %v361
    %408 = vmatprep.subr.mxu0 0.0
    %409 = vmatpush1.msra.mxu0 %v360
    %410 = vmatprep.subr.mxu0 0.0
    %411 = vmatpush1.msra.mxu0 %v359
    %412 = vmatprep.subr.mxu0 0.0
    %413 = vmatpush1.msra.mxu0 %v358
    %414 = vmatprep.subr.mxu0 0.0
    %415 = vmatpush2.msra.mxu0 0.0
    %416 = vmatprep.subr.mxu0 0.0
    %417 = vmatpush2.msra.mxu0 0.0
    %418 = vmatprep.subr.mxu0 0.0
    %419 = vmatpush2.msra.mxu0 0.0
    %420 = vmatprep.subr.mxu0 0.0
    %421 = vmatpush2.msra.mxu0 0.0
    %422 = vmatprep.subr.mxu0 0.0
    %423 = vmatpush2.msra.mxu0 0.0
    %424 = vmatprep.subr.mxu0 0.0
    %425 = vmatpush2.msra.mxu0 0.0
    %426 = vmatprep.subr.mxu0 0.0
    %427 = vmatpush2.msra.mxu0 0.0
    %428 = vmatprep.subr.mxu0 0.0
    %429 = vmatpush2.msra.mxu0 0.0
    %430 = vmatprep.subr.mxu0 0.0
    %431 = vmatpush2.msra.mxu0 0.0
    %432 = vmatprep.subr.mxu0 0.0
    %433 = vmatpush2.msra.mxu0 0.0
    %434 = vmatprep.subr.mxu0 0.0
    %435 = vmatpush2.msra.mxu0 0.0
    %436 = vmatprep.subr.mxu0 0.0
    %437 = vmatpush2.msra.mxu0 0.0
    %438 = vmatprep.subr.mxu0 0.0
    %439 = vmatpush2.msra.mxu0 0.0
    %440 = vmatprep.subr.mxu0 0.0
    %441 = vmatpush2.msra.mxu0 0.0
    %442 = vmatprep.subr.mxu0 0.0
    %443 = vmatpush2.msra.mxu0 0.0
    %444 = vmatprep.subr.mxu0 0.0
    %445 = vmatpush2.msra.mxu0 0.0
    %446 = vmatprep.mubr.f32.mxu0 0.0
    %447 = vmatmul.mubr.f32.gmra.mxu0 %v355
    %v448 = vpop.f32.mrf.mxu0
    %v449 = vadd.f32 %v380, %v448
    %v450 = vpop.f32.mrf.mxu0
    %451 = vmatprep.mubr.f32.mxu0 0.0
    %452 = vmatmul.mubr.f32.gmra.mxu0 %v356
    %v453 = vpop.f32.mrf.mxu0
    %v454 = vadd.f32 %v380, %v453
    %v455 = vpop.f32.mrf.mxu0
    %456 = vdwg.mxu0
    %457 = vst [vmem:[#allocation8] sm:$0xff] %v449
    %458 = vst [vmem:[#allocation8 + $0x8] sm:$0xff] %v454
    // Predicated region
    $region30: #{tpu_custom_call.1} parent=1 // pred_check
      _
    $region31: #{tpu_custom_call.1} parent=1 // pred_check_branch
      %460 = sbr.rel (0) target = $region33
    $region32: #{tpu_custom_call.1} parent=1 // pred_region
      %s462 = ssub.s32 256, 256
      %463 = vsyncadd [#allocation4], %s462
      %s464 = sshll.u32 [#allocation8], 4
      %s465 = int_to_ptr.vmem [resolvable:$true] %s464
      %470 = dma.vmem_to_hbm [thread:$0]  %s465, 256, %s4, [#allocation4], 128, 128, 8
    $region33: #{tpu_custom_call.1} parent=1 // pred_fallthru
      _
    // Predicated region
    $region34: #{tpu_custom_call.1} parent=1 // pred_check
      _
    $region35: #{tpu_custom_call.1} parent=1 // pred_check_branch
      %472 = sbr.rel (0) target = $region37
    $region36: #{tpu_custom_call.1} parent=1 // pred_region
      %473 = dma.done [#allocation4], 256
    $region37: #{tpu_custom_call.1} parent=1 // pred_fallthru
      _
    %474 = vsyncpa [#allocation3], 1
    %475 = vsyncpa [#allocation6], 1
    %476 = vsyncpa [#allocation4], 1

</llo_original>
